<compile_context>
chip_gen: v7x
topology: tpu7x:2x2x1
jax: 0.10.0
libtpu: 0.0.40
codegen_flags: <defaults>
</compile_context>

<pallas_src>
import functools

import jax
import jax.numpy as jnp
from jax.experimental import pallas as pl
from jax.experimental.pallas import tpu as pltpu

_BN_EPS = 1e-5  # nn.BatchNorm2d default


def _haar_matrices(n, j):
    """1-D composite J-level Haar analysis operators ('zero' mode, n % 2**j == 0).

    Returns (low, high), both (n // 2**j, n):
      low  = J lowpass levels (block average, scale 2^{-J/2})
      high = one highpass applied after (J-1) lowpass levels (+/- 2^{-J/2})
    Matches pytorch_wavelets DWTForward(J=j, mode='zero', wave='haar').
    """
    m = n // (2 ** j)
    scale = 2.0 ** (-j / 2.0)
    k = jnp.arange(n)
    i = jnp.arange(m)[:, None]
    in_block = (k[None, :] // (2 ** j)) == i
    low = jnp.where(in_block, scale, 0.0).astype(jnp.float32)
    first_half = (k[None, :] % (2 ** j)) < (2 ** (j - 1))
    high = jnp.where(in_block, jnp.where(first_half, scale, -scale), 0.0)
    return low, high.astype(jnp.float32)


def hwfa_kernel(x_ref, bT_ref, aM_ref, w_ref, shift_ref, o_ref, *, C, H, W, Hp, Wp):
    # x_ref block: (1, C*H, W)   -- one batch element, channels*rows on M axis
    # bT_ref:      (W, 2*Wp)     -- [bl^T | bh^T]  W-direction Haar factors
    # aM_ref:      (2*Hp, H)     -- [al ; ah]      H-direction Haar factors
    # w_ref:       (half, 4*C)   -- conv2 weight, BN-scale folded, first half rows
    # shift_ref:   (half, 1)     -- folded conv-bias/BN shift, first half rows
    x2 = x_ref[0]                                                      # (C*H, W)

    # ---- DWT stage 1: W-direction transform (low & high fused in one matmul) ----
    u = jnp.dot(x2, bT_ref[...], preferred_element_type=jnp.float32)   # (C*H, 2*Wp)
    u3 = u.reshape(C, H, 2 * Wp)

    # ---- DWT stage 2: H-direction transform, batched over channels ----
    a_b = jnp.broadcast_to(aM_ref[...][None, :, :], (C, 2 * Hp, H))
    v = jax.lax.dot_general(
        a_b, u3,
        dimension_numbers=(((2,), (1,)), ((0,), (0,))),
        preferred_element_type=jnp.float32)                            # (C, 2*Hp, 2*Wp)

    # ---- stack the 4 sub-bands along channels, order [LL, HL, LH, HH] ----
    ll = v[:, :Hp, :Wp]
    hl = v[:, Hp:, :Wp]   # high along H, low along W  (yH[...][:, :, 0])
    lh = v[:, :Hp, Wp:]   # low along H, high along W  (yH[...][:, :, 1])
    hh = v[:, Hp:, Wp:]   # high/high                  (yH[...][:, :, 2])
    s = jnp.concatenate([ll, hl, lh, hh], axis=0).reshape(4 * C, Hp * Wp)

    # ---- fused 1x1 conv + folded BatchNorm + ReLU (first out_ch//2 only) ----
    act = jnp.dot(w_ref[...], s, preferred_element_type=jnp.float32) + shift_ref[...]
    o_ref[0] = jnp.maximum(act, 0.0)


def hwfa_forward(x, y, params, j_n, out_ch):
    B, C, H, W = x.shape
    assert H % (2 ** j_n) == 0 and W % (2 ** j_n) == 0
    Hp, Wp = H >> j_n, W >> j_n
    Np = Hp * Wp
    half = out_ch // 2

    # Separable 1-D Haar factors (a few KiB instead of dense (H*W, Hp*Wp) krons).
    al, ah = _haar_matrices(H, j_n)                  # (Hp, H)
    bl, bh = _haar_matrices(W, j_n)                  # (Wp, W)
    aM = jnp.concatenate([al, ah], axis=0)           # (2*Hp, H)
    bT = jnp.concatenate([bl, bh], axis=0).T         # (W, 2*Wp)

    # Fold conv bias + inference BatchNorm into the conv weights; keep only the
    # first out_ch//2 output channels (the only ones forward() ever uses).
    scale = params["gamma"] * jax.lax.rsqrt(params["var"] + _BN_EPS)
    w_f = (params["w2"] * scale[:, None])[:half].astype(jnp.float32)            # (half, 4C)
    shift = (params["beta"] + (params["b2"] - params["mean"]) * scale)[:half]
    shift = shift.reshape(half, 1).astype(jnp.float32)

    xr = x.reshape(B, C * H, W).astype(jnp.float32)

    kernel = functools.partial(hwfa_kernel, C=C, H=H, W=W, Hp=Hp, Wp=Wp)

    act = pl.pallas_call(
        kernel,
        out_shape=jax.ShapeDtypeStruct((B, half, Np), jnp.float32),
        grid=(B,),
        in_specs=[
            pl.BlockSpec((1, C * H, W), lambda b: (b, 0, 0)),   # x (per batch element)
            pl.BlockSpec((W, 2 * Wp), lambda b: (0, 0)),        # W-direction factors
            pl.BlockSpec((2 * Hp, H), lambda b: (0, 0)),        # H-direction factors
            pl.BlockSpec((half, 4 * C), lambda b: (0, 0)),      # fused conv weight
            pl.BlockSpec((half, 1), lambda b: (0, 0)),          # fused shift
        ],
        out_specs=pl.BlockSpec((1, half, Np), lambda b: (b, 0, 0)),
        compiler_params=pltpu.CompilerParams(dimension_semantics=("parallel",)),
    )(xr, bT, aM, w_f, shift)

    # Channel concat with y happens outside the kernel: no HBM->VMEM->HBM round
    # trip of data the kernel never touches.
    act = act.reshape(B, half, Hp, Wp)
    return jnp.concatenate([y[:, :half].astype(act.dtype), act], axis=1)


def hwfa_reference(x, y, params, j_n, out_ch):
    """Pure-JAX reference mirroring the PyTorch forward (haar DWT, 'zero' mode)."""
    ll = x
    for _ in range(j_n):
        a = ll[:, :, 0::2, 0::2]
        b = ll[:, :, 0::2, 1::2]
        c = ll[:, :, 1::2, 0::2]
        d = ll[:, :, 1::2, 1::2]
        yh0 = 0.5 * (a + b - c - d)   # yH[.][:, :, 0]
        yh1 = 0.5 * (a - b + c - d)   # yH[.][:, :, 1]
        yh2 = 0.5 * (a - b - c + d)   # yH[.][:, :, 2]
        ll = 0.5 * (a + b + c + d)
    feat = jnp.concatenate([ll, yh0, yh1, yh2], axis=1)
    conv = (jnp.einsum("oc,bchw->bohw", params["w2"], feat)
            + params["b2"][None, :, None, None])
    inv = 1.0 / jnp.sqrt(params["var"] + _BN_EPS)
    bn = ((conv - params["mean"][None, :, None, None])
          * inv[None, :, None, None]
          * params["gamma"][None, :, None, None]
          + params["beta"][None, :, None, None])
    act = jnp.maximum(bn, 0.0)
    half = out_ch // 2
    return jnp.concatenate([y[:, :half], act[:, :half]], axis=1)


if __name__ == "__main__":
    B, in_ch, out_ch, J_n = 2, 4, 8, 2
    H = W = 16
    Hp, Wp = H >> J_n, W >> J_n

    key = jax.random.PRNGKey(0)
    kx, ky, kw, kb, kg, kbe, km, kv = jax.random.split(key, 8)

    x = jax.random.normal(kx, (B, in_ch, H, W), jnp.float32)
    y = jax.random.normal(ky, (B, out_ch, Hp, Wp), jnp.float32)

    params = {
        "w2": 0.2 * jax.random.normal(kw, (out_ch, 4 * in_ch), jnp.float32),
        "b2": 0.1 * jax.random.normal(kb, (out_ch,), jnp.float32),
        "gamma": 1.0 + 0.1 * jax.random.normal(kg, (out_ch,), jnp.float32),
        "beta": 0.1 * jax.random.normal(kbe, (out_ch,), jnp.float32),
        "mean": 0.1 * jax.random.normal(km, (out_ch,), jnp.float32),
        "var": 0.5 + jax.random.uniform(kv, (out_ch,), jnp.float32),
    }

    out = hwfa_forward(x, y, params, J_n, out_ch)
    out = jax.block_until_ready(out)

    ref = hwfa_reference(x, y, params, J_n, out_ch)
    assert out.shape == (B, out_ch, Hp, Wp), out.shape
    if not jnp.allclose(out, ref, atol=1e-4, rtol=1e-4):
        raise AssertionError(
            f"kernel/reference mismatch, max abs err = {jnp.max(jnp.abs(out - ref))}")

    print("KERNEL_OK")
</pallas_src>

<mosaic_0001>
module attributes {stable_mosaic.version = 11 : i64} {
  func.func @hwfa_kernel(%arg0: i32, %arg1: memref<1x64x16xf32, #tpu.memory_space<vmem>>, %arg2: memref<16x8xf32, #tpu.memory_space<vmem>>, %arg3: memref<8x16xf32, #tpu.memory_space<vmem>>, %arg4: memref<4x16xf32, #tpu.memory_space<vmem>>, %arg5: memref<4x1xf32, #tpu.memory_space<vmem>>, %arg6: memref<1x4x16xf32, #tpu.memory_space<vmem>>) attributes {dimension_semantics = [#tpu.dimension_semantics<parallel>], iteration_bounds = array<i64: 2>, scalar_prefetch = 0 : i64, scratch_operands = 0 : i64, tpu.core_type = #tpu.core_type<tc>, window_params = [{transform_indices = @transform_0, window_bounds = array<i64: 1, 64, 16>}, {pipeline_mode = #tpu.pipeline_mode<synchronous>, transform_indices = @transform_1, window_bounds = array<i64: 16, 8>}, {pipeline_mode = #tpu.pipeline_mode<synchronous>, transform_indices = @transform_2, window_bounds = array<i64: 8, 16>}, {pipeline_mode = #tpu.pipeline_mode<synchronous>, transform_indices = @transform_3, window_bounds = array<i64: 4, 16>}, {pipeline_mode = #tpu.pipeline_mode<synchronous>, transform_indices = @transform_4, window_bounds = array<i64: 4, 1>}, {transform_indices = @transform_5, window_bounds = array<i64: 1, 4, 16>}]} {
    %c0 = arith.constant 0 : index
    %c0_0 = arith.constant 0 : index
    %c0_1 = arith.constant 0 : index
    %0 = vector.load %arg1[%c0, %c0_0, %c0_1] : memref<1x64x16xf32, #tpu.memory_space<vmem>>, vector<1x64x16xf32>
    %1 = vector.shape_cast %0 : vector<1x64x16xf32> to vector<64x16xf32>
    %c0_2 = arith.constant 0 : index
    %c0_3 = arith.constant 0 : index
    %2 = vector.load %arg2[%c0_2, %c0_3] : memref<16x8xf32, #tpu.memory_space<vmem>>, vector<16x8xf32>
    %cst = arith.constant dense<0.000000e+00> : vector<64x8xf32>
    %3 = tpu.matmul %1, %2, %cst {dimension_numbers = #tpu.dot_dimension_numbers<[1], [0], [0], [1], [0, 0, 1, 1], [], []>} : vector<64x16xf32>, vector<16x8xf32>, vector<64x8xf32> -> vector<64x8xf32>
    %4 = vector.shape_cast %3 : vector<64x8xf32> to vector<4x16x8xf32>
    %c0_4 = arith.constant 0 : index
    %c0_5 = arith.constant 0 : index
    %5 = vector.load %arg3[%c0_4, %c0_5] : memref<8x16xf32, #tpu.memory_space<vmem>>, vector<8x16xf32>
    %6 = vector.shape_cast %5 : vector<8x16xf32> to vector<1x8x16xf32>
    %7 = vector.shape_cast %6 : vector<1x8x16xf32> to vector<1x8x16xf32>
    %8 = vector.broadcast %7 : vector<1x8x16xf32> to vector<4x8x16xf32>
    %cst_6 = arith.constant dense<0.000000e+00> : vector<4x8x8xf32>
    %9 = tpu.matmul %8, %4, %cst_6 {dimension_numbers = #tpu.dot_dimension_numbers<[2], [1], [1], [2], [0, 0, 0, 1, 1, 2], [0], [0]>} : vector<4x8x16xf32>, vector<4x16x8xf32>, vector<4x8x8xf32> -> vector<4x8x8xf32>
    %10 = vector.extract_strided_slice %9 {offsets = [0, 0, 0], sizes = [4, 4, 4], strides = [1, 1, 1]} : vector<4x8x8xf32> to vector<4x4x4xf32>
    %11 = vector.extract_strided_slice %9 {offsets = [0, 4, 0], sizes = [4, 4, 4], strides = [1, 1, 1]} : vector<4x8x8xf32> to vector<4x4x4xf32>
    %12 = vector.extract_strided_slice %9 {offsets = [0, 0, 4], sizes = [4, 4, 4], strides = [1, 1, 1]} : vector<4x8x8xf32> to vector<4x4x4xf32>
    %13 = vector.extract_strided_slice %9 {offsets = [0, 4, 4], sizes = [4, 4, 4], strides = [1, 1, 1]} : vector<4x8x8xf32> to vector<4x4x4xf32>
    %14 = tpu.concatenate %10, %11, %12, %13 in 0 : vector<4x4x4xf32>, vector<4x4x4xf32>, vector<4x4x4xf32>, vector<4x4x4xf32> -> vector<16x4x4xf32>
    %15 = vector.shape_cast %14 : vector<16x4x4xf32> to vector<16x16xf32>
    %c0_7 = arith.constant 0 : index
    %c0_8 = arith.constant 0 : index
    %16 = vector.load %arg4[%c0_7, %c0_8] : memref<4x16xf32, #tpu.memory_space<vmem>>, vector<4x16xf32>
    %cst_9 = arith.constant dense<0.000000e+00> : vector<4x16xf32>
    %17 = tpu.matmul %16, %15, %cst_9 {dimension_numbers = #tpu.dot_dimension_numbers<[1], [0], [0], [1], [0, 0, 1, 1], [], []>} : vector<4x16xf32>, vector<16x16xf32>, vector<4x16xf32> -> vector<4x16xf32>
    %c0_10 = arith.constant 0 : index
    %c0_11 = arith.constant 0 : index
    %18 = vector.load %arg5[%c0_10, %c0_11] : memref<4x1xf32, #tpu.memory_space<vmem>>, vector<4x1xf32>
    %19 = vector.broadcast %18 : vector<4x1xf32> to vector<4x16xf32>
    %20 = arith.addf %17, %19 : vector<4x16xf32>
    %cst_12 = arith.constant 0.000000e+00 : f32
    %21 = vector.broadcast %cst_12 : f32 to vector<4x16xf32>
    %22 = arith.maximumf %20, %21 : vector<4x16xf32>
    %c0_13 = arith.constant 0 : index
    %c0_14 = arith.constant 0 : index
    %c0_15 = arith.constant 0 : index
    %23 = vector.load %arg6[%c0_13, %c0_14, %c0_15] : memref<1x4x16xf32, #tpu.memory_space<vmem>>, vector<1x4x16xf32>
    %24 = vector.shape_cast %23 : vector<1x4x16xf32> to vector<4x16xf32>
    %25 = vector.shape_cast %22 : vector<4x16xf32> to vector<1x4x16xf32>
    tpu.vector_store %arg6[%c0_13, %c0_14, %c0_15], %25 {strides = array<i32>} : memref<1x4x16xf32, #tpu.memory_space<vmem>>, vector<1x4x16xf32>,
    return
  }
  func.func @transform_0(%arg0: i32) -> (i32, i32, i32) {
    %c0_i32 = arith.constant 0 : i32
    %c0_i32_0 = arith.constant 0 : i32
    %c0_i32_1 = arith.constant 0 : i32
    return %arg0, %c0_i32, %c0_i32_0 : i32, i32, i32
  }
  func.func @transform_1(%arg0: i32) -> (i32, i32) {
    %c0_i32 = arith.constant 0 : i32
    %c0_i32_0 = arith.constant 0 : i32
    %c0_i32_1 = arith.constant 0 : i32
    return %c0_i32, %c0_i32_0 : i32, i32
  }
  func.func @transform_2(%arg0: i32) -> (i32, i32) {
    %c0_i32 = arith.constant 0 : i32
    %c0_i32_0 = arith.constant 0 : i32
    %c0_i32_1 = arith.constant 0 : i32
    return %c0_i32, %c0_i32_0 : i32, i32
  }
  func.func @transform_3(%arg0: i32) -> (i32, i32) {
    %c0_i32 = arith.constant 0 : i32
    %c0_i32_0 = arith.constant 0 : i32
    %c0_i32_1 = arith.constant 0 : i32
    return %c0_i32, %c0_i32_0 : i32, i32
  }
  func.func @transform_4(%arg0: i32) -> (i32, i32) {
    %c0_i32 = arith.constant 0 : i32
    %c0_i32_0 = arith.constant 0 : i32
    %c0_i32_1 = arith.constant 0 : i32
    return %c0_i32, %c0_i32_0 : i32, i32
  }
  func.func @transform_5(%arg0: i32) -> (i32, i32, i32) {
    %c0_i32 = arith.constant 0 : i32
    %c0_i32_0 = arith.constant 0 : i32
    %c0_i32_1 = arith.constant 0 : i32
    return %arg0, %c0_i32, %c0_i32_0 : i32, i32, i32
  }
}

</mosaic_0001>

<llo_original>
// kernel: tpu_custom_call.1
$region0: #{tpu_custom_call.1}
  #allocation0 [shape = 'u32[]', space=smem, size = 0x4, offset = 0x4, fixed_abs, tag = 'smem constant byte address 0x4 - core index']
  #allocation1 [shape = 'u32[144,128]{1,0:T(1,128)}', space=vmem, size = 0x12000, scoped, tag = 'internal scratch']
  %s0 = inlined_call_operand.vmem [shape: f32[2,64,16], index: 0, kind: input, shape index: {}]
  %s1 = inlined_call_operand.vmem [shape: f32[16,8], index: 1, kind: input, shape index: {}]
  %s2 = inlined_call_operand.vmem [shape: f32[8,16], index: 2, kind: input, shape index: {}]
  %s3 = inlined_call_operand.vmem [shape: f32[4,16], index: 3, kind: input, shape index: {}]
  %s4 = inlined_call_operand.vmem [shape: f32[4,1], index: 4, kind: input, shape index: {}]
  %s5 = inlined_call_operand.hbm [shape: f32[2,4,16], index: 5, kind: output, shape index: {}]
  %s6 = sld [smem:[#allocation0]]
  $region53: #{tpu_custom_call.1} parent=0
    _
  %s8 = ssub.s32 1, %s6
  %s9 = scalar_select 0, %s8, %s6
  $region1: #{tpu_custom_call.1} parent=0
    #allocation2 [shape = 'u8[4096]{0}', space=vmem, size = 0x1000, scoped, tag = 'output window, operand 0']
    #allocation3 [shape = 's32[2]{0}', space=sflag, size = 0x8, scoped, tag = 'scoped memory for tpu_custom_call.1']
    %10 = vsyncpa [#allocation3], 0
    %s11 = scalar_lea.sflag [#allocation3], 1
    %12 = vsyncpa %s11, 0
    loop: start=0, step=1, limit=4
    $region2: #{tpu_custom_call.1} parent=1 // loop_pre_header
      _
    $region3: #{tpu_custom_call.1} parent=1 // loop_header
      %s14 = sphi 0, %s18
      %p15 = scmp.ge.s32.totalorder %s14, 4
      %s24 = sphi 0, %s26
      %s27 = sphi 0, %s24
      %s28 = sphi 0, %s27
      %s44 = sphi 0, %s28
      %s48 = sphi 0, %s48
      %s50 = sphi 0, %s48
      %s51 = sphi 0, %s50
      %s65 = sphi 0, %s51
      %s69 = sphi 0, %s69
      %s71 = sphi 0, %s69
      %s72 = sphi 0, %s71
      %s86 = sphi 0, %s72
      %s90 = sphi 0, %s90
      %s92 = sphi 0, %s90
      %s93 = sphi 0, %s92
      %s107 = sphi 0, %s93
      %s111 = sphi 0, %s111
      %s113 = sphi 0, %s111
      %s114 = sphi 0, %s113
      %s128 = sphi 0, %s114
      %s134 = sphi 0, %s136
      %s137 = sphi 0, %s134
      %s138 = sphi 0, %s137
      %s154 = sphi 0, %s138
    $region4: #{tpu_custom_call.1} parent=1 // loop_header_branch
      %17 = sbr.rel (%p15) target = $region8
    $region5: #{tpu_custom_call.1} parent=1 // loop_body
      %s19 = ssub.s32 %s14, 1
      %s20 = ssub.s32 %s14, 2
      %s21 = sadd.s32 %s14, 1
      %s22 = ssub.s32 %s14, %s21
      %p23 = scmp.eq.s32.totalorder %s22, 0
      %s25 = sadd.s32 %s24, 1
      %s26 = scalar_select %p23, %s24, %s25
      %p29 = pneg %p23
      %p30 = scmp.eq.s32.totalorder %s14, 1
      %p31 = por %p29, %p30
      %p32 = scmp.ne.s32.totalorder %s24, %s27
      %p33 = scmp.eq.s32.totalorder %s14, 0
      %p34 = por %p32, %p33
      %p35 = scmp.ne.s32.totalorder %s24, %s27
      %p36 = scmp.eq.s32.totalorder %s19, 1
      %p37 = por %p35, %p36
      %p38 = scmp.ne.s32.totalorder %s27, %s28
      %p39 = scmp.eq.s32.totalorder %s19, 0
      %p40 = por %p38, %p39
      %p41 = scmp.ne.s32.totalorder %s27, %s28
      %p42 = scmp.eq.s32.totalorder %s20, 1
      %p43 = por %p41, %p42
      %p45 = scmp.ne.s32.totalorder %s28, %s44
      %p46 = scmp.eq.s32.totalorder %s20, 0
      %p47 = por %p45, %p46
      %s49 = sadd.s32 %s48, 1
      %p52 = scmp.eq.s32.totalorder %s14, 1
      %p53 = scmp.ne.s32.totalorder %s48, %s50
      %p54 = scmp.eq.s32.totalorder %s14, 0
      %p55 = por %p53, %p54
      %p56 = scmp.ne.s32.totalorder %s48, %s50
      %p57 = scmp.eq.s32.totalorder %s19, 1
      %p58 = por %p56, %p57
      %p59 = scmp.ne.s32.totalorder %s50, %s51
      %p60 = scmp.eq.s32.totalorder %s19, 0
      %p61 = por %p59, %p60
      %p62 = scmp.ne.s32.totalorder %s50, %s51
      %p63 = scmp.eq.s32.totalorder %s20, 1
      %p64 = por %p62, %p63
      %p66 = scmp.ne.s32.totalorder %s51, %s65
      %p67 = scmp.eq.s32.totalorder %s20, 0
      %p68 = por %p66, %p67
      %s70 = sadd.s32 %s69, 1
      %p73 = scmp.eq.s32.totalorder %s14, 1
      %p74 = scmp.ne.s32.totalorder %s69, %s71
      %p75 = scmp.eq.s32.totalorder %s14, 0
      %p76 = por %p74, %p75
      %p77 = scmp.ne.s32.totalorder %s69, %s71
      %p78 = scmp.eq.s32.totalorder %s19, 1
      %p79 = por %p77, %p78
      %p80 = scmp.ne.s32.totalorder %s71, %s72
      %p81 = scmp.eq.s32.totalorder %s19, 0
      %p82 = por %p80, %p81
      %p83 = scmp.ne.s32.totalorder %s71, %s72
      %p84 = scmp.eq.s32.totalorder %s20, 1
      %p85 = por %p83, %p84
      %p87 = scmp.ne.s32.totalorder %s72, %s86
      %p88 = scmp.eq.s32.totalorder %s20, 0
      %p89 = por %p87, %p88
      %s91 = sadd.s32 %s90, 1
      %p94 = scmp.eq.s32.totalorder %s14, 1
      %p95 = scmp.ne.s32.totalorder %s90, %s92
      %p96 = scmp.eq.s32.totalorder %s14, 0
      %p97 = por %p95, %p96
      %p98 = scmp.ne.s32.totalorder %s90, %s92
      %p99 = scmp.eq.s32.totalorder %s19, 1
      %p100 = por %p98, %p99
      %p101 = scmp.ne.s32.totalorder %s92, %s93
      %p102 = scmp.eq.s32.totalorder %s19, 0
      %p103 = por %p101, %p102
      %p104 = scmp.ne.s32.totalorder %s92, %s93
      %p105 = scmp.eq.s32.totalorder %s20, 1
      %p106 = por %p104, %p105
      %p108 = scmp.ne.s32.totalorder %s93, %s107
      %p109 = scmp.eq.s32.totalorder %s20, 0
      %p110 = por %p108, %p109
      %s112 = sadd.s32 %s111, 1
      %p115 = scmp.eq.s32.totalorder %s14, 1
      %p116 = scmp.ne.s32.totalorder %s111, %s113
      %p117 = scmp.eq.s32.totalorder %s14, 0
      %p118 = por %p116, %p117
      %p119 = scmp.ne.s32.totalorder %s111, %s113
      %p120 = scmp.eq.s32.totalorder %s19, 1
      %p121 = por %p119, %p120
      %p122 = scmp.ne.s32.totalorder %s113, %s114
      %p123 = scmp.eq.s32.totalorder %s19, 0
      %p124 = por %p122, %p123
      %p125 = scmp.ne.s32.totalorder %s113, %s114
      %p126 = scmp.eq.s32.totalorder %s20, 1
      %p127 = por %p125, %p126
      %p129 = scmp.ne.s32.totalorder %s114, %s128
      %p130 = scmp.eq.s32.totalorder %s20, 0
      %p131 = por %p129, %p130
      %s132 = ssub.s32 %s14, %s21
      %p133 = scmp.eq.s32.totalorder %s132, 0
      %s135 = sadd.s32 %s134, 1
      %s136 = scalar_select %p133, %s134, %s135
      %p139 = pneg %p133
      %p140 = scmp.eq.s32.totalorder %s14, 1
      %p141 = por %p139, %p140
      %p142 = scmp.ne.s32.totalorder %s134, %s137
      %p143 = scmp.eq.s32.totalorder %s14, 0
      %p144 = por %p142, %p143
      %p145 = scmp.ne.s32.totalorder %s134, %s137
      %p146 = scmp.eq.s32.totalorder %s19, 1
      %p147 = por %p145, %p146
      %p148 = scmp.ne.s32.totalorder %s137, %s138
      %p149 = scmp.eq.s32.totalorder %s19, 0
      %p150 = por %p148, %p149
      %p151 = scmp.ne.s32.totalorder %s137, %s138
      %p152 = scmp.eq.s32.totalorder %s20, 1
      %p153 = por %p151, %p152
      %p155 = scmp.ne.s32.totalorder %s138, %s154
      %p156 = scmp.eq.s32.totalorder %s20, 0
      %p157 = por %p155, %p156
      %p158 = scmp.le.s32.totalorder 1, %s14
      %p159 = scmp.lt.s32.totalorder %s14, 3
      %p160 = pnand %p158, %p159
      %p161 = pneg %p160
      // Predicated region
      $region9: #{tpu_custom_call.1} parent=5 // pred_check
        _
      $region10: #{tpu_custom_call.1} parent=5 // pred_check_branch
        %163 = sbr.rel (%p160) target = $region12
      $region11: #{tpu_custom_call.1} parent=5 // pred_region
        %s164 = ssub.s32 %s14, 1
        // Predicated region
        $region13: #{tpu_custom_call.1} parent=11 // pred_check
          %p165 = pneg %p61
        $region14: #{tpu_custom_call.1} parent=11 // pred_check_branch
          %167 = sbr.rel (%p165) target = $region16
        $region15: #{tpu_custom_call.1} parent=11 // pred_region
          _
        $region16: #{tpu_custom_call.1} parent=11 // pred_fallthru
          _
        // Predicated region
        $region17: #{tpu_custom_call.1} parent=11 // pred_check
          %p168 = pneg %p82
        $region18: #{tpu_custom_call.1} parent=11 // pred_check_branch
          %170 = sbr.rel (%p168) target = $region20
        $region19: #{tpu_custom_call.1} parent=11 // pred_region
          _
        $region20: #{tpu_custom_call.1} parent=11 // pred_fallthru
          _
        // Predicated region
        $region21: #{tpu_custom_call.1} parent=11 // pred_check
          %p171 = pneg %p103
        $region22: #{tpu_custom_call.1} parent=11 // pred_check_branch
          %173 = sbr.rel (%p171) target = $region24
        $region23: #{tpu_custom_call.1} parent=11 // pred_region
          _
        $region24: #{tpu_custom_call.1} parent=11 // pred_fallthru
          _
        // Predicated region
        $region25: #{tpu_custom_call.1} parent=11 // pred_check
          %p174 = pneg %p124
        $region26: #{tpu_custom_call.1} parent=11 // pred_check_branch
          %176 = sbr.rel (%p174) target = $region28
        $region27: #{tpu_custom_call.1} parent=11 // pred_region
          _
        $region28: #{tpu_custom_call.1} parent=11 // pred_fallthru
          _
      $region12: #{tpu_custom_call.1} parent=5 // pred_fallthru
        _
      %p177 = scmp.lt.s32.totalorder %s14, 2
      // Predicated region
      $region29: #{tpu_custom_call.1} parent=5 // pred_check
        %p178 = pneg %p177
      $region30: #{tpu_custom_call.1} parent=5 // pred_check_branch
        %180 = sbr.rel (%p178) target = $region32
      $region31: #{tpu_custom_call.1} parent=5 // pred_region
        // Predicated region
        $region33: #{tpu_custom_call.1} parent=31 // pred_check
          %p181 = pneg %p34
        $region34: #{tpu_custom_call.1} parent=31 // pred_check_branch
          %183 = sbr.rel (%p181) target = $region36
        $region35: #{tpu_custom_call.1} parent=31 // pred_region
          %p184 = scmp.lt.s32.totalorder %s14, 1
          %s185 = scalar_select %p184, %s14, 1
          %s186 = smul.addr %s185, 8
          %s187 = smul.addr %s186, 8
          %s188 = scalar_lea.vmem %s0, %s187
        $region36: #{tpu_custom_call.1} parent=31 // pred_fallthru
          _
      $region32: #{tpu_custom_call.1} parent=5 // pred_fallthru
        _
      %p189 = scmp.le.s32.totalorder 1, %s14
      %p190 = scmp.lt.s32.totalorder %s14, 3
      %p191 = pnand %p189, %p190
      %p192 = pneg %p191
      // Predicated region
      $region37: #{tpu_custom_call.1} parent=5 // pred_check
        _
      $region38: #{tpu_custom_call.1} parent=5 // pred_check_branch
        %194 = sbr.rel (%p191) target = $region40
      $region39: #{tpu_custom_call.1} parent=5 // pred_region
        %s195 = ssub.s32 %s14, 1
        %p196 = scmp.lt.s32.totalorder %s19, 1
        %s197 = scalar_select %p196, %s19, 1
        %s198 = smul.addr %s197, 8
        %s199 = smul.addr %s198, 8
        %s200 = scalar_lea.vmem %s0, %s199
        %p201 = pneg %p40
        %p202 = pneg %p37
        %p203 = pneg %p61
        %p204 = pneg %p58
        %p205 = pneg %p82
        %p206 = pneg %p79
        %p207 = pneg %p103
        %p208 = pneg %p100
        %p209 = pneg %p124
        %p210 = pneg %p121
        %p211 = pneg %p150
        %p212 = pneg %p147
        %s213 = sand.u32 %s137, 1
        %s214 = scalar_lea.sflag [#allocation3], %s213
        %s215 = sand.u32 %s137, 1
        %s216 = smul.addr %s215, 4
        %s217 = scalar_lea.vmem [#allocation2], %s216
        %p218 = scmp.lt.s32.totalorder %s19, 1
        %s219 = scalar_select %p218, %s19, 1
        %s220 = smul.addr %s219, 8
        %s221 = smul.addr %s220, 8
        %s222 = scalar_lea.vmem %s0, %s221
        %v223 = vld [vmem:[%s222] sm:$0xff]
        %v224 = vld [vmem:[%s222 + $0x8] sm:$0xff]
        %v225 = vld [vmem:[%s222 + $0x10] sm:$0xff]
        %v226 = vld [vmem:[%s222 + $0x18] sm:$0xff]
        %v227 = vld [vmem:[%s222 + $0x20] sm:$0xff]
        %v228 = vld [vmem:[%s222 + $0x28] sm:$0xff]
        %v229 = vld [vmem:[%s222 + $0x30] sm:$0xff]
        %v230 = vld [vmem:[%s222 + $0x38] sm:$0xff]
        %v231 = vld [vmem:[%s1] sm:$0xff]
        %v232 = vld [vmem:[%s1 + $0x8] sm:$0xff]
        %vm233 = vcmask 130048
        %v235 = vsel %vm233, %v223, 0
        %v238 = vsel %vm233, %v224, 0
        %v241 = vsel %vm233, %v225, 0
        %v244 = vsel %vm233, %v226, 0
        %v247 = vsel %vm233, %v227, 0
        %v250 = vsel %vm233, %v228, 0
        %v253 = vsel %vm233, %v229, 0
        %v256 = vsel %vm233, %v230, 0
        %258 = vmatprep.subr.mxu0 0.0
        %259 = vmatpush1.msra.mxu0 %v231
        %260 = vmatprep.subr.mxu0 0.0
        %261 = vmatpush1.msra.mxu0 %v232
        %262 = vmatprep.subr.mxu0 0.0
        %263 = vmatpush1.msra.mxu0 0.0
        %264 = vmatprep.subr.mxu0 0.0
        %265 = vmatpush1.msra.mxu0 0.0
        %266 = vmatprep.subr.mxu0 0.0
        %267 = vmatpush1.msra.mxu0 0.0
        %268 = vmatprep.subr.mxu0 0.0
        %269 = vmatpush1.msra.mxu0 0.0
        %270 = vmatprep.subr.mxu0 0.0
        %271 = vmatpush1.msra.mxu0 0.0
        %272 = vmatprep.subr.mxu0 0.0
        %273 = vmatpush1.msra.mxu0 0.0
        %274 = vmatprep.subr.mxu0 0.0
        %275 = vmatpush1.msra.mxu0 0.0
        %276 = vmatprep.subr.mxu0 0.0
        %277 = vmatpush1.msra.mxu0 0.0
        %278 = vmatprep.subr.mxu0 0.0
        %279 = vmatpush1.msra.mxu0 0.0
        %280 = vmatprep.subr.mxu0 0.0
        %281 = vmatpush1.msra.mxu0 0.0
        %282 = vmatprep.subr.mxu0 0.0
        %283 = vmatpush1.msra.mxu0 0.0
        %284 = vmatprep.subr.mxu0 0.0
        %285 = vmatpush1.msra.mxu0 0.0
        %286 = vmatprep.subr.mxu0 0.0
        %287 = vmatpush1.msra.mxu0 0.0
        %288 = vmatprep.subr.mxu0 0.0
        %289 = vmatpush1.msra.mxu0 0.0
        %290 = vmatprep.subr.mxu0 0.0
        %291 = vmatpush1.msra.mxu0 0.0
        %292 = vmatprep.subr.mxu0 0.0
        %293 = vmatpush1.msra.mxu0 0.0
        %294 = vmatprep.subr.mxu0 0.0
        %295 = vmatpush1.msra.mxu0 0.0
        %296 = vmatprep.subr.mxu0 0.0
        %297 = vmatpush1.msra.mxu0 0.0
        %298 = vmatprep.subr.mxu0 0.0
        %299 = vmatpush1.msra.mxu0 0.0
        %300 = vmatprep.subr.mxu0 0.0
        %301 = vmatpush1.msra.mxu0 0.0
        %302 = vmatprep.subr.mxu0 0.0
        %303 = vmatpush1.msra.mxu0 0.0
        %304 = vmatprep.subr.mxu0 0.0
        %305 = vmatpush1.msra.mxu0 0.0
        %306 = vmatprep.subr.mxu0 0.0
        %307 = vmatpush1.msra.mxu0 0.0
        %308 = vmatprep.subr.mxu0 0.0
        %309 = vmatpush1.msra.mxu0 0.0
        %310 = vmatprep.subr.mxu0 0.0
        %311 = vmatpush1.msra.mxu0 0.0
        %312 = vmatprep.subr.mxu0 0.0
        %313 = vmatpush1.msra.mxu0 0.0
        %314 = vmatprep.subr.mxu0 0.0
        %315 = vmatpush1.msra.mxu0 0.0
        %316 = vmatprep.subr.mxu0 0.0
        %317 = vmatpush1.msra.mxu0 0.0
        %318 = vmatprep.subr.mxu0 0.0
        %319 = vmatpush1.msra.mxu0 0.0
        %320 = vmatprep.subr.mxu0 0.0
        %321 = vmatpush1.msra.mxu0 0.0
        %322 = vmatprep.mubr.f32.mxu0 0.0
        %323 = vmatmul.mubr.f32.gmra.mrb[0].mxu0 %v235
        %v324 = vpop.f32.mrb[0].mxu0
        %v325 = vadd.f32 0.0, %v324
        %v326 = vpop.f32.mrb[0].mxu0
        %327 = vmatprep.mubr.f32.mxu0 0.0
        %328 = vmatmul.mubr.f32.gmra.mrb[0].mxu0 %v238
        %v329 = vpop.f32.mrb[0].mxu0
        %v330 = vadd.f32 0.0, %v329
        %v331 = vpop.f32.mrb[0].mxu0
        %332 = vmatprep.mubr.f32.mxu0 0.0
        %333 = vmatmul.mubr.f32.gmra.mrb[0].mxu0 %v241
        %v334 = vpop.f32.mrb[0].mxu0
        %v335 = vadd.f32 0.0, %v334
        %v336 = vpop.f32.mrb[0].mxu0
        %337 = vmatprep.mubr.f32.mxu0 0.0
        %338 = vmatmul.mubr.f32.gmra.mrb[0].mxu0 %v244
        %v339 = vpop.f32.mrb[0].mxu0
        %v340 = vadd.f32 0.0, %v339
        %v341 = vpop.f32.mrb[0].mxu0
        %342 = vmatprep.mubr.f32.mxu0 0.0
        %343 = vmatmul.mubr.f32.gmra.mrb[0].mxu0 %v247
        %v344 = vpop.f32.mrb[0].mxu0
        %v345 = vadd.f32 0.0, %v344
        %v346 = vpop.f32.mrb[0].mxu0
        %347 = vmatprep.mubr.f32.mxu0 0.0
        %348 = vmatmul.mubr.f32.gmra.mrb[0].mxu0 %v250
        %v349 = vpop.f32.mrb[0].mxu0
        %v350 = vadd.f32 0.0, %v349
        %v351 = vpop.f32.mrb[0].mxu0
        %352 = vmatprep.mubr.f32.mxu0 0.0
        %353 = vmatmul.mubr.f32.gmra.mrb[0].mxu0 %v253
        %v354 = vpop.f32.mrb[0].mxu0
        %v355 = vadd.f32 0.0, %v354
        %v356 = vpop.f32.mrb[0].mxu0
        %357 = vmatprep.mubr.f32.mxu0 0.0
        %358 = vmatmul.mubr.f32.gmra.mrb[0].mxu0 %v256
        %v359 = vpop.f32.mrb[0].mxu0
        %v360 = vadd.f32 0.0, %v359
        %v361 = vpop.f32.mrb[0].mxu0
        %362 = vdwg.mxu0
        %v363 = vld [vmem:[%s2] sm:$0xff]
        %v365 = vsel %vm233, %v363, 0
        %367 = vmatprep.subr.mxu0 0.0
        %368 = vmatpush1.msra.mxu0 %v325
        %369 = vmatprep.subr.mxu0 0.0
        %370 = vmatpush1.msra.mxu0 %v330
        %371 = vmatprep.subr.mxu0 0.0
        %372 = vmatpush1.msra.mxu0 0.0
        %373 = vmatprep.subr.mxu0 0.0
        %374 = vmatpush1.msra.mxu0 0.0
        %375 = vmatprep.subr.mxu0 0.0
        %376 = vmatpush1.msra.mxu0 0.0
        %377 = vmatprep.subr.mxu0 0.0
        %378 = vmatpush1.msra.mxu0 0.0
        %379 = vmatprep.subr.mxu0 0.0
        %380 = vmatpush1.msra.mxu0 0.0
        %381 = vmatprep.subr.mxu0 0.0
        %382 = vmatpush1.msra.mxu0 0.0
        %383 = vmatprep.subr.mxu0 0.0
        %384 = vmatpush1.msra.mxu0 0.0
        %385 = vmatprep.subr.mxu0 0.0
        %386 = vmatpush1.msra.mxu0 0.0
        %387 = vmatprep.subr.mxu0 0.0
        %388 = vmatpush1.msra.mxu0 0.0
        %389 = vmatprep.subr.mxu0 0.0
        %390 = vmatpush1.msra.mxu0 0.0
        %391 = vmatprep.subr.mxu0 0.0
        %392 = vmatpush1.msra.mxu0 0.0
        %393 = vmatprep.subr.mxu0 0.0
        %394 = vmatpush1.msra.mxu0 0.0
        %395 = vmatprep.subr.mxu0 0.0
        %396 = vmatpush1.msra.mxu0 0.0
        %397 = vmatprep.subr.mxu0 0.0
        %398 = vmatpush1.msra.mxu0 0.0
        %399 = vmatprep.subr.mxu0 0.0
        %400 = vmatpush1.msra.mxu0 0.0
        %401 = vmatprep.subr.mxu0 0.0
        %402 = vmatpush1.msra.mxu0 0.0
        %403 = vmatprep.subr.mxu0 0.0
        %404 = vmatpush1.msra.mxu0 0.0
        %405 = vmatprep.subr.mxu0 0.0
        %406 = vmatpush1.msra.mxu0 0.0
        %407 = vmatprep.subr.mxu0 0.0
        %408 = vmatpush1.msra.mxu0 0.0
        %409 = vmatprep.subr.mxu0 0.0
        %410 = vmatpush1.msra.mxu0 0.0
        %411 = vmatprep.subr.mxu0 0.0
        %412 = vmatpush1.msra.mxu0 0.0
        %413 = vmatprep.subr.mxu0 0.0
        %414 = vmatpush1.msra.mxu0 0.0
        %415 = vmatprep.subr.mxu0 0.0
        %416 = vmatpush1.msra.mxu0 0.0
        %417 = vmatprep.subr.mxu0 0.0
        %418 = vmatpush1.msra.mxu0 0.0
        %419 = vmatprep.subr.mxu0 0.0
        %420 = vmatpush1.msra.mxu0 0.0
        %421 = vmatprep.subr.mxu0 0.0
        %422 = vmatpush1.msra.mxu0 0.0
        %423 = vmatprep.subr.mxu0 0.0
        %424 = vmatpush1.msra.mxu0 0.0
        %425 = vmatprep.subr.mxu0 0.0
        %426 = vmatpush1.msra.mxu0 0.0
        %427 = vmatprep.subr.mxu0 0.0
        %428 = vmatpush1.msra.mxu0 0.0
        %429 = vmatprep.subr.mxu0 0.0
        %430 = vmatpush1.msra.mxu0 0.0
        %431 = vmatprep.mubr.f32.mxu0 0.0
        %432 = vmatmul.mubr.f32.gmra.mrb[0].mxu0 %v365
        %v433 = vpop.f32.mrb[0].mxu0
        %v434 = vadd.f32 0.0, %v433
        %v435 = vpop.f32.mrb[0].mxu0
        %436 = vdwg.mxu0
        %437 = vmatprep.subr.mxu0 0.0
        %438 = vmatpush1.msra.mxu0 %v335
        %439 = vmatprep.subr.mxu0 0.0
        %440 = vmatpush1.msra.mxu0 %v340
        %441 = vmatprep.subr.mxu0 0.0
        %442 = vmatpush1.msra.mxu0 0.0
        %443 = vmatprep.subr.mxu0 0.0
        %444 = vmatpush1.msra.mxu0 0.0
        %445 = vmatprep.subr.mxu0 0.0
        %446 = vmatpush1.msra.mxu0 0.0
        %447 = vmatprep.subr.mxu0 0.0
        %448 = vmatpush1.msra.mxu0 0.0
        %449 = vmatprep.subr.mxu0 0.0
        %450 = vmatpush1.msra.mxu0 0.0
        %451 = vmatprep.subr.mxu0 0.0
        %452 = vmatpush1.msra.mxu0 0.0
        %453 = vmatprep.subr.mxu0 0.0
        %454 = vmatpush1.msra.mxu0 0.0
        %455 = vmatprep.subr.mxu0 0.0
        %456 = vmatpush1.msra.mxu0 0.0
        %457 = vmatprep.subr.mxu0 0.0
        %458 = vmatpush1.msra.mxu0 0.0
        %459 = vmatprep.subr.mxu0 0.0
        %460 = vmatpush1.msra.mxu0 0.0
        %461 = vmatprep.subr.mxu0 0.0
        %462 = vmatpush1.msra.mxu0 0.0
        %463 = vmatprep.subr.mxu0 0.0
        %464 = vmatpush1.msra.mxu0 0.0
        %465 = vmatprep.subr.mxu0 0.0
        %466 = vmatpush1.msra.mxu0 0.0
        %467 = vmatprep.subr.mxu0 0.0
        %468 = vmatpush1.msra.mxu0 0.0
        %469 = vmatprep.subr.mxu0 0.0
        %470 = vmatpush1.msra.mxu0 0.0
        %471 = vmatprep.subr.mxu0 0.0
        %472 = vmatpush1.msra.mxu0 0.0
        %473 = vmatprep.subr.mxu0 0.0
        %474 = vmatpush1.msra.mxu0 0.0
        %475 = vmatprep.subr.mxu0 0.0
        %476 = vmatpush1.msra.mxu0 0.0
        %477 = vmatprep.subr.mxu0 0.0
        %478 = vmatpush1.msra.mxu0 0.0
        %479 = vmatprep.subr.mxu0 0.0
        %480 = vmatpush1.msra.mxu0 0.0
        %481 = vmatprep.subr.mxu0 0.0
        %482 = vmatpush1.msra.mxu0 0.0
        %483 = vmatprep.subr.mxu0 0.0
        %484 = vmatpush1.msra.mxu0 0.0
        %485 = vmatprep.subr.mxu0 0.0
        %486 = vmatpush1.msra.mxu0 0.0
        %487 = vmatprep.subr.mxu0 0.0
        %488 = vmatpush1.msra.mxu0 0.0
        %489 = vmatprep.subr.mxu0 0.0
        %490 = vmatpush1.msra.mxu0 0.0
        %491 = vmatprep.subr.mxu0 0.0
        %492 = vmatpush1.msra.mxu0 0.0
        %493 = vmatprep.subr.mxu0 0.0
        %494 = vmatpush1.msra.mxu0 0.0
        %495 = vmatprep.subr.mxu0 0.0
        %496 = vmatpush1.msra.mxu0 0.0
        %497 = vmatprep.subr.mxu0 0.0
        %498 = vmatpush1.msra.mxu0 0.0
        %499 = vmatprep.subr.mxu0 0.0
        %500 = vmatpush1.msra.mxu0 0.0
        %501 = vmatprep.mubr.f32.mxu0 0.0
        %502 = vmatmul.mubr.f32.gmra.mrb[0].mxu0 %v365
        %v503 = vpop.f32.mrb[0].mxu0
        %v504 = vadd.f32 0.0, %v503
        %v505 = vpop.f32.mrb[0].mxu0
        %506 = vdwg.mxu0
        %507 = vmatprep.subr.mxu0 0.0
        %508 = vmatpush1.msra.mxu0 %v345
        %509 = vmatprep.subr.mxu0 0.0
        %510 = vmatpush1.msra.mxu0 %v350
        %511 = vmatprep.subr.mxu0 0.0
        %512 = vmatpush1.msra.mxu0 0.0
        %513 = vmatprep.subr.mxu0 0.0
        %514 = vmatpush1.msra.mxu0 0.0
        %515 = vmatprep.subr.mxu0 0.0
        %516 = vmatpush1.msra.mxu0 0.0
        %517 = vmatprep.subr.mxu0 0.0
        %518 = vmatpush1.msra.mxu0 0.0
        %519 = vmatprep.subr.mxu0 0.0
        %520 = vmatpush1.msra.mxu0 0.0
        %521 = vmatprep.subr.mxu0 0.0
        %522 = vmatpush1.msra.mxu0 0.0
        %523 = vmatprep.subr.mxu0 0.0
        %524 = vmatpush1.msra.mxu0 0.0
        %525 = vmatprep.subr.mxu0 0.0
        %526 = vmatpush1.msra.mxu0 0.0
        %527 = vmatprep.subr.mxu0 0.0
        %528 = vmatpush1.msra.mxu0 0.0
        %529 = vmatprep.subr.mxu0 0.0
        %530 = vmatpush1.msra.mxu0 0.0
        %531 = vmatprep.subr.mxu0 0.0
        %532 = vmatpush1.msra.mxu0 0.0
        %533 = vmatprep.subr.mxu0 0.0
        %534 = vmatpush1.msra.mxu0 0.0
        %535 = vmatprep.subr.mxu0 0.0
        %536 = vmatpush1.msra.mxu0 0.0
        %537 = vmatprep.subr.mxu0 0.0
        %538 = vmatpush1.msra.mxu0 0.0
        %539 = vmatprep.subr.mxu0 0.0
        %540 = vmatpush1.msra.mxu0 0.0
        %541 = vmatprep.subr.mxu0 0.0
        %542 = vmatpush1.msra.mxu0 0.0
        %543 = vmatprep.subr.mxu0 0.0
        %544 = vmatpush1.msra.mxu0 0.0
        %545 = vmatprep.subr.mxu0 0.0
        %546 = vmatpush1.msra.mxu0 0.0
        %547 = vmatprep.subr.mxu0 0.0
        %548 = vmatpush1.msra.mxu0 0.0
        %549 = vmatprep.subr.mxu0 0.0
        %550 = vmatpush1.msra.mxu0 0.0
        %551 = vmatprep.subr.mxu0 0.0
        %552 = vmatpush1.msra.mxu0 0.0
        %553 = vmatprep.subr.mxu0 0.0
        %554 = vmatpush1.msra.mxu0 0.0
        %555 = vmatprep.subr.mxu0 0.0
        %556 = vmatpush1.msra.mxu0 0.0
        %557 = vmatprep.subr.mxu0 0.0
        %558 = vmatpush1.msra.mxu0 0.0
        %559 = vmatprep.subr.mxu0 0.0
        %560 = vmatpush1.msra.mxu0 0.0
        %561 = vmatprep.subr.mxu0 0.0
        %562 = vmatpush1.msra.mxu0 0.0
        %563 = vmatprep.subr.mxu0 0.0
        %564 = vmatpush1.msra.mxu0 0.0
        %565 = vmatprep.subr.mxu0 0.0
        %566 = vmatpush1.msra.mxu0 0.0
        %567 = vmatprep.subr.mxu0 0.0
        %568 = vmatpush1.msra.mxu0 0.0
        %569 = vmatprep.subr.mxu0 0.0
        %570 = vmatpush1.msra.mxu0 0.0
        %571 = vmatprep.mubr.f32.mxu0 0.0
        %572 = vmatmul.mubr.f32.gmra.mrb[0].mxu0 %v365
        %v573 = vpop.f32.mrb[0].mxu0
        %v574 = vadd.f32 0.0, %v573
        %v575 = vpop.f32.mrb[0].mxu0
        %576 = vdwg.mxu0
        %577 = vmatprep.subr.mxu0 0.0
        %578 = vmatpush1.msra.mxu0 %v355
        %579 = vmatprep.subr.mxu0 0.0
        %580 = vmatpush1.msra.mxu0 %v360
        %581 = vmatprep.subr.mxu0 0.0
        %582 = vmatpush1.msra.mxu0 0.0
        %583 = vmatprep.subr.mxu0 0.0
        %584 = vmatpush1.msra.mxu0 0.0
        %585 = vmatprep.subr.mxu0 0.0
        %586 = vmatpush1.msra.mxu0 0.0
        %587 = vmatprep.subr.mxu0 0.0
        %588 = vmatpush1.msra.mxu0 0.0
        %589 = vmatprep.subr.mxu0 0.0
        %590 = vmatpush1.msra.mxu0 0.0
        %591 = vmatprep.subr.mxu0 0.0
        %592 = vmatpush1.msra.mxu0 0.0
        %593 = vmatprep.subr.mxu0 0.0
        %594 = vmatpush1.msra.mxu0 0.0
        %595 = vmatprep.subr.mxu0 0.0
        %596 = vmatpush1.msra.mxu0 0.0
        %597 = vmatprep.subr.mxu0 0.0
        %598 = vmatpush1.msra.mxu0 0.0
        %599 = vmatprep.subr.mxu0 0.0
        %600 = vmatpush1.msra.mxu0 0.0
        %601 = vmatprep.subr.mxu0 0.0
        %602 = vmatpush1.msra.mxu0 0.0
        %603 = vmatprep.subr.mxu0 0.0
        %604 = vmatpush1.msra.mxu0 0.0
        %605 = vmatprep.subr.mxu0 0.0
        %606 = vmatpush1.msra.mxu0 0.0
        %607 = vmatprep.subr.mxu0 0.0
        %608 = vmatpush1.msra.mxu0 0.0
        %609 = vmatprep.subr.mxu0 0.0
        %610 = vmatpush1.msra.mxu0 0.0
        %611 = vmatprep.subr.mxu0 0.0
        %612 = vmatpush1.msra.mxu0 0.0
        %613 = vmatprep.subr.mxu0 0.0
        %614 = vmatpush1.msra.mxu0 0.0
        %615 = vmatprep.subr.mxu0 0.0
        %616 = vmatpush1.msra.mxu0 0.0
        %617 = vmatprep.subr.mxu0 0.0
        %618 = vmatpush1.msra.mxu0 0.0
        %619 = vmatprep.subr.mxu0 0.0
        %620 = vmatpush1.msra.mxu0 0.0
        %621 = vmatprep.subr.mxu0 0.0
        %622 = vmatpush1.msra.mxu0 0.0
        %623 = vmatprep.subr.mxu0 0.0
        %624 = vmatpush1.msra.mxu0 0.0
        %625 = vmatprep.subr.mxu0 0.0
        %626 = vmatpush1.msra.mxu0 0.0
        %627 = vmatprep.subr.mxu0 0.0
        %628 = vmatpush1.msra.mxu0 0.0
        %629 = vmatprep.subr.mxu0 0.0
        %630 = vmatpush1.msra.mxu0 0.0
        %631 = vmatprep.subr.mxu0 0.0
        %632 = vmatpush1.msra.mxu0 0.0
        %633 = vmatprep.subr.mxu0 0.0
        %634 = vmatpush1.msra.mxu0 0.0
        %635 = vmatprep.subr.mxu0 0.0
        %636 = vmatpush1.msra.mxu0 0.0
        %637 = vmatprep.subr.mxu0 0.0
        %638 = vmatpush1.msra.mxu0 0.0
        %639 = vmatprep.subr.mxu0 0.0
        %640 = vmatpush1.msra.mxu0 0.0
        %641 = vmatprep.mubr.f32.mxu0 0.0
        %642 = vmatmul.mubr.f32.gmra.mrb[0].mxu0 %v365
        %v643 = vpop.f32.mrb[0].mxu0
        %v644 = vadd.f32 0.0, %v643
        %v645 = vpop.f32.mrb[0].mxu0
        %646 = vdwg.mxu0
        %v651 = vrot.slane %v434, 4
        %v652 = vrot.slane %v504, 4
        %v653 = vrot.slane %v574, 4
        %v654 = vrot.slane %v644, 4
        %659 = vrot.lane.b32.xlu0 %v434, 124
        %v660 = vpop.permute.xlu0 %659
        %661 = vrot.lane.b32.xlu0 %v504, 124
        %v662 = vpop.permute.xlu0 %661
        %663 = vrot.lane.b32.xlu0 %v574, 124
        %v664 = vpop.permute.xlu0 %663
        %665 = vrot.lane.b32.xlu0 %v644, 124
        %v666 = vpop.permute.xlu0 %665
        %671 = vrot.lane.b32.xlu0 %v651, 124
        %v672 = vpop.permute.xlu0 %671
        %673 = vrot.lane.b32.xlu0 %v652, 124
        %v674 = vpop.permute.xlu0 %673
        %675 = vrot.lane.b32.xlu0 %v653, 124
        %v676 = vpop.permute.xlu0 %675
        %677 = vrot.lane.b32.xlu0 %v654, 124
        %v678 = vpop.permute.xlu0 %677
        %v683 = vcombine.low %v434, %v574
        %v685 = vunpack.c.l.s4 1983009808
        %v686 = vunpack.c.0.s8 %v685
        %v687 = vlaneseq
        %v688 = vshrl.u32 %v687, 7
        %v689 = vsub.s32 %v686, %v688
        %v690 = vrot.slane %v683, %v689
        %v691 = vcombine.low %v504, %v644
        %v693 = vunpack.c.l.s4 1983009808
        %v694 = vunpack.c.0.s8 %v693
        %v695 = vlaneseq
        %v696 = vshrl.u32 %v695, 7
        %v697 = vsub.s32 %v694, %v696
        %v698 = vrot.slane %v691, %v697
        %v699 = vcombine.low %v651, %v653
        %v701 = vunpack.c.l.s4 1983009808
        %v702 = vunpack.c.0.s8 %v701
        %v703 = vlaneseq
        %v704 = vshrl.u32 %v703, 7
        %v705 = vsub.s32 %v702, %v704
        %v706 = vrot.slane %v699, %v705
        %v707 = vcombine.low %v652, %v654
        %v709 = vunpack.c.l.s4 1983009808
        %v710 = vunpack.c.0.s8 %v709
        %v711 = vlaneseq
        %v712 = vshrl.u32 %v711, 7
        %v713 = vsub.s32 %v710, %v712
        %v714 = vrot.slane %v707, %v713
        %v715 = vcombine.low %v690, %v698
        %v716 = vcombine.high %v690, %v698
        %v718 = vunpack.c.l.s4 1934713408
        %v719 = vunpack.c.0.s8 %v718
        %v720 = vlaneseq
        %v721 = vshrl.u32 %v720, 7
        %v722 = vsub.s32 %v719, %v721
        %v723 = vrot.slane %v715, %v722
        %v725 = vunpack.c.l.s4 1934713408
        %v726 = vunpack.c.0.s8 %v725
        %v727 = vlaneseq
        %v728 = vshrl.u32 %v727, 7
        %v729 = vsub.s32 %v726, %v728
        %v730 = vrot.slane %v716, %v729
        %v731 = vcombine.low %v706, %v714
        %v732 = vcombine.high %v706, %v714
        %v734 = vunpack.c.l.s4 1934713408
        %v735 = vunpack.c.0.s8 %v734
        %v736 = vlaneseq
        %v737 = vshrl.u32 %v736, 7
        %v738 = vsub.s32 %v735, %v737
        %v739 = vrot.slane %v731, %v738
        %v741 = vunpack.c.l.s4 1934713408
        %v742 = vunpack.c.0.s8 %v741
        %v743 = vlaneseq
        %v744 = vshrl.u32 %v743, 7
        %v745 = vsub.s32 %v742, %v744
        %v746 = vrot.slane %v732, %v745
        %v747 = vcombine.low %v723, %v739
        %v748 = vcombine.high %v723, %v739
        %v749 = vcombine.low %v730, %v746
        %v750 = vcombine.high %v730, %v746
        %v751 = vcombine.low %v660, %v664
        %v753 = vunpack.c.l.s4 1983009808
        %v754 = vunpack.c.0.s8 %v753
        %v755 = vlaneseq
        %v756 = vshrl.u32 %v755, 7
        %v757 = vsub.s32 %v754, %v756
        %v758 = vrot.slane %v751, %v757
        %v759 = vcombine.low %v662, %v666
        %v761 = vunpack.c.l.s4 1983009808
        %v762 = vunpack.c.0.s8 %v761
        %v763 = vlaneseq
        %v764 = vshrl.u32 %v763, 7
        %v765 = vsub.s32 %v762, %v764
        %v766 = vrot.slane %v759, %v765
        %v767 = vcombine.low %v672, %v676
        %v769 = vunpack.c.l.s4 1983009808
        %v770 = vunpack.c.0.s8 %v769
        %v771 = vlaneseq
        %v772 = vshrl.u32 %v771, 7
        %v773 = vsub.s32 %v770, %v772
        %v774 = vrot.slane %v767, %v773
        %v775 = vcombine.low %v674, %v678
        %v777 = vunpack.c.l.s4 1983009808
        %v778 = vunpack.c.0.s8 %v777
        %v779 = vlaneseq
        %v780 = vshrl.u32 %v779, 7
        %v781 = vsub.s32 %v778, %v780
        %v782 = vrot.slane %v775, %v781
        %v783 = vcombine.low %v758, %v766
        %v784 = vcombine.high %v758, %v766
        %v786 = vunpack.c.l.s4 1934713408
        %v787 = vunpack.c.0.s8 %v786
        %v788 = vlaneseq
        %v789 = vshrl.u32 %v788, 7
        %v790 = vsub.s32 %v787, %v789
        %v791 = vrot.slane %v783, %v790
        %v793 = vunpack.c.l.s4 1934713408
        %v794 = vunpack.c.0.s8 %v793
        %v795 = vlaneseq
        %v796 = vshrl.u32 %v795, 7
        %v797 = vsub.s32 %v794, %v796
        %v798 = vrot.slane %v784, %v797
        %v799 = vcombine.low %v774, %v782
        %v800 = vcombine.high %v774, %v782
        %v802 = vunpack.c.l.s4 1934713408
        %v803 = vunpack.c.0.s8 %v802
        %v804 = vlaneseq
        %v805 = vshrl.u32 %v804, 7
        %v806 = vsub.s32 %v803, %v805
        %v807 = vrot.slane %v799, %v806
        %v809 = vunpack.c.l.s4 1934713408
        %v810 = vunpack.c.0.s8 %v809
        %v811 = vlaneseq
        %v812 = vshrl.u32 %v811, 7
        %v813 = vsub.s32 %v810, %v812
        %v814 = vrot.slane %v800, %v813
        %v815 = vcombine.low %v791, %v807
        %v816 = vcombine.high %v791, %v807
        %v817 = vcombine.low %v798, %v814
        %v818 = vcombine.high %v798, %v814
        %821 = vrot.lane.b32.xlu0 %v748, 4
        %v822 = vpop.permute.xlu0 %821
        %823 = vrot.lane.b32.xlu0 %v816, 4
        %v824 = vpop.permute.xlu0 %823
        %829 = vrot.lane.b32.xlu0 %v749, 8
        %v830 = vpop.permute.xlu0 %829
        %831 = vrot.lane.b32.xlu0 %v817, 8
        %v832 = vpop.permute.xlu0 %831
        %837 = vrot.lane.b32.xlu0 %v750, 12
        %v838 = vpop.permute.xlu0 %837
        %839 = vrot.lane.b32.xlu0 %v818, 12
        %v840 = vpop.permute.xlu0 %839
        %vm843 = vcmask 31744
        %v844 = vsel %vm843, %v747, %v822
        %v845 = vsel %vm843, %v815, %v824
        %vm846 = vcmask 64512
        %v847 = vsel %vm846, %v844, %v830
        %v848 = vsel %vm846, %v845, %v832
        %vm849 = vcmask 97280
        %v850 = vsel %vm849, %v847, %v838
        %v851 = vsel %vm849, %v848, %v840
        %v852 = vld [vmem:[%s3] sm:$0xf]
        %v853 = vld [vmem:[%s4] sm:$0xf]
        %855 = vset.pattern.permute.xlu0 0
        %856 = vperm.xlu0 %855, %v853
        %v857 = vpop.permute.xlu0 %856
        %v860 = vsel %vm233, %v852, 0
        %862 = vmatprep.subr.mxu0 0.0
        %863 = vmatpush1.msra.mxu0 %v850
        %864 = vmatprep.subr.mxu0 0.0
        %865 = vmatpush1.msra.mxu0 %v851
        %866 = vmatprep.subr.mxu0 0.0
        %867 = vmatpush1.msra.mxu0 0.0
        %868 = vmatprep.subr.mxu0 0.0
        %869 = vmatpush1.msra.mxu0 0.0
        %870 = vmatprep.subr.mxu0 0.0
        %871 = vmatpush1.msra.mxu0 0.0
        %872 = vmatprep.subr.mxu0 0.0
        %873 = vmatpush1.msra.mxu0 0.0
        %874 = vmatprep.subr.mxu0 0.0
        %875 = vmatpush1.msra.mxu0 0.0
        %876 = vmatprep.subr.mxu0 0.0
        %877 = vmatpush1.msra.mxu0 0.0
        %878 = vmatprep.subr.mxu0 0.0
        %879 = vmatpush1.msra.mxu0 0.0
        %880 = vmatprep.subr.mxu0 0.0
        %881 = vmatpush1.msra.mxu0 0.0
        %882 = vmatprep.subr.mxu0 0.0
        %883 = vmatpush1.msra.mxu0 0.0
        %884 = vmatprep.subr.mxu0 0.0
        %885 = vmatpush1.msra.mxu0 0.0
        %886 = vmatprep.subr.mxu0 0.0
        %887 = vmatpush1.msra.mxu0 0.0
        %888 = vmatprep.subr.mxu0 0.0
        %889 = vmatpush1.msra.mxu0 0.0
        %890 = vmatprep.subr.mxu0 0.0
        %891 = vmatpush1.msra.mxu0 0.0
        %892 = vmatprep.subr.mxu0 0.0
        %893 = vmatpush1.msra.mxu0 0.0
        %894 = vmatprep.subr.mxu0 0.0
        %895 = vmatpush1.msra.mxu0 0.0
        %896 = vmatprep.subr.mxu0 0.0
        %897 = vmatpush1.msra.mxu0 0.0
        %898 = vmatprep.subr.mxu0 0.0
        %899 = vmatpush1.msra.mxu0 0.0
        %900 = vmatprep.subr.mxu0 0.0
        %901 = vmatpush1.msra.mxu0 0.0
        %902 = vmatprep.subr.mxu0 0.0
        %903 = vmatpush1.msra.mxu0 0.0
        %904 = vmatprep.subr.mxu0 0.0
        %905 = vmatpush1.msra.mxu0 0.0
        %906 = vmatprep.subr.mxu0 0.0
        %907 = vmatpush1.msra.mxu0 0.0
        %908 = vmatprep.subr.mxu0 0.0
        %909 = vmatpush1.msra.mxu0 0.0
        %910 = vmatprep.subr.mxu0 0.0
        %911 = vmatpush1.msra.mxu0 0.0
        %912 = vmatprep.subr.mxu0 0.0
        %913 = vmatpush1.msra.mxu0 0.0
        %914 = vmatprep.subr.mxu0 0.0
        %915 = vmatpush1.msra.mxu0 0.0
        %916 = vmatprep.subr.mxu0 0.0
        %917 = vmatpush1.msra.mxu0 0.0
        %918 = vmatprep.subr.mxu0 0.0
        %919 = vmatpush1.msra.mxu0 0.0
        %920 = vmatprep.subr.mxu0 0.0
        %921 = vmatpush1.msra.mxu0 0.0
        %922 = vmatprep.subr.mxu0 0.0
        %923 = vmatpush1.msra.mxu0 0.0
        %924 = vmatprep.subr.mxu0 0.0
        %925 = vmatpush1.msra.mxu0 0.0
        %926 = vmatprep.mubr.f32.mxu0 0.0
        %927 = vmatmul.mubr.f32.gmra.mrb[0].mxu0 %v860
        %v928 = vpop.f32.mrb[0].mxu0
        %v929 = vadd.f32 %v857, %v928
        %v930 = vpop.f32.mrb[0].mxu0
        %931 = vdwg.mxu0
        %v932 = vmax.f32 %v929, 0.0
        %vm933 = vcmask 125952
        %934 = vst.msk [vmem:[%s217] sm:$0xf] %vm933, %v932
        %s935 = sand.u32 %s137, 1
        %s936 = scalar_lea.sflag [#allocation3], %s935
        %s937 = sand.u32 %s137, 1
        %s938 = smul.addr %s937, 4
        %s939 = scalar_lea.vmem [#allocation2], %s938
        // Predicated region
        $region41: #{tpu_custom_call.1} parent=39 // pred_check
          %p940 = pneg %p147
        $region42: #{tpu_custom_call.1} parent=39 // pred_check_branch
          %942 = sbr.rel (%p940) target = $region44
        $region43: #{tpu_custom_call.1} parent=39 // pred_region
          %s944 = ssub.s32 64, 64
          %945 = vsyncadd %s936, %s944
          %s946 = smul.addr %s19, 64
          %s947 = scalar_lea.hbm %s5, %s946
          %s949 = sshll.u32 %s939, 4
          %s950 = int_to_ptr.vmem [resolvable:$true] %s949
          %952 = dma.vmem_to_hbm [thread:$0]  %s950, 64, %s947, %s936
        $region44: #{tpu_custom_call.1} parent=39 // pred_fallthru
          _
      $region40: #{tpu_custom_call.1} parent=5 // pred_fallthru
        _
      %p953 = scmp.le.s32.totalorder 2, %s14
      // Predicated region
      $region45: #{tpu_custom_call.1} parent=5 // pred_check
        %p954 = pneg %p953
      $region46: #{tpu_custom_call.1} parent=5 // pred_check_branch
        %956 = sbr.rel (%p954) target = $region48
      $region47: #{tpu_custom_call.1} parent=5 // pred_region
        %s957 = ssub.s32 %s14, 2
        // Predicated region
        $region49: #{tpu_custom_call.1} parent=47 // pred_check
          %p958 = pneg %p153
        $region50: #{tpu_custom_call.1} parent=47 // pred_check_branch
          %960 = sbr.rel (%p958) target = $region52
        $region51: #{tpu_custom_call.1} parent=47 // pred_region
          %s961 = sand.u32 %s138, 1
          %s962 = scalar_lea.sflag [#allocation3], %s961
          %s963 = sand.u32 %s138, 1
          %s964 = smul.addr %s963, 4
          %s965 = scalar_lea.vmem [#allocation2], %s964
          %966 = dma.done %s962, 64
        $region52: #{tpu_custom_call.1} parent=47 // pred_fallthru
          _
      $region48: #{tpu_custom_call.1} parent=5 // pred_fallthru
        _
    $region6: #{tpu_custom_call.1} parent=1 // loop_footer
      %s18 = sadd.s32 1, %s14
    $region7: #{tpu_custom_call.1} parent=1 // loop_footer_branch
      %13 = sbr.rel target = $region3
    $region8: #{tpu_custom_call.1} parent=1 // loop_exit
      _
    %967 = vsyncpa [#allocation3], 1
    %s968 = scalar_lea.sflag [#allocation3], 1
    %969 = vsyncpa %s968, 1

</llo_original>
